<compile_context>
chip_gen: v7x
topology: tpu7x:2x2x1
jax: 0.10.0
libtpu: 0.0.40
codegen_flags: <defaults>
</compile_context>

<pallas_src>
import functools

import jax
import jax.numpy as jnp
from jax.experimental import pallas as pl
from jax.experimental.pallas import tpu as pltpu


def _round_up(n, m):
    return ((n + m - 1) // m) * m


def _nbeats_kernel(x_ref,
                   w0_ref, b0_ref,
                   w1_ref, b1_ref,
                   w2_ref, b2_ref,
                   wf_ref, bf_ref,
                   basis_ref):
    """One batch tile of the N-BEATS block.

    h     = ReLU(ReLU(ReLU(x@W0+b0)@W1+b1)@W2+b2)
    basis = h @ W_fused + b_fused          (W_fused = W3@Wb, b_fused = b3@Wb+bb)

    x arrives in native f32 and is cast to bf16 in-kernel (VPU cast, free vs
    the HBM pass a wrapper-side astype would cost).  Matmul operands are bf16
    (MXU path); accumulation, bias-add and ReLU stay f32 (v5e VPU has no bf16).
    """
    cd = w0_ref.dtype  # compute dtype fed to the MXU (bf16)

    h = jnp.dot(x_ref[...].astype(cd), w0_ref[...],
                preferred_element_type=jnp.float32) + b0_ref[...]
    h = jnp.maximum(h, 0.0)

    h = jnp.dot(h.astype(cd), w1_ref[...],
                preferred_element_type=jnp.float32) + b1_ref[...]
    h = jnp.maximum(h, 0.0)

    h = jnp.dot(h.astype(cd), w2_ref[...],
                preferred_element_type=jnp.float32) + b2_ref[...]
    h = jnp.maximum(h, 0.0)

    basis = jnp.dot(h.astype(cd), wf_ref[...],
                    preferred_element_type=jnp.float32) + bf_ref[...]
    basis_ref[...] = basis.astype(basis_ref.dtype)


def prepare_params(params, compute_dtype=jnp.bfloat16, hidden_pad_to=128):
    """One-time parameter preparation (call once, outside the per-step path).

    * Fuses layer-3 with the basis expansion in f32 (exact).
    * Zero-pads the hidden dim to a multiple of `hidden_pad_to` so every
      intermediate activation is lane-dense (exact: ReLU(0)=0 and zero rows of
      the next weight contribute nothing).
    * Casts MXU-side weights to bf16; biases stay f32.
    """
    f32 = jnp.float32
    w0, w1, w2, w3, wb = (params[k].astype(f32) for k in ("w0", "w1", "w2", "w3", "wb"))
    b0, b1, b2, b3, bb = (params[k].astype(f32) for k in ("b0", "b1", "b2", "b3", "bb"))

    # Algebraic fusion of the theta layer with the basis expansion.
    wf = w3 @ wb                     # (hidden, basis)
    bf = b3 @ wb + bb                # (1, basis)

    hidden = w0.shape[1]
    hp = _round_up(hidden, hidden_pad_to)
    if hp != hidden:
        dh = hp - hidden
        w0 = jnp.pad(w0, ((0, 0), (0, dh)))
        b0 = jnp.pad(b0, ((0, 0), (0, dh)))
        w1 = jnp.pad(w1, ((0, dh), (0, dh)))
        b1 = jnp.pad(b1, ((0, 0), (0, dh)))
        w2 = jnp.pad(w2, ((0, dh), (0, dh)))
        b2 = jnp.pad(b2, ((0, 0), (0, dh)))
        wf = jnp.pad(wf, ((0, dh), (0, 0)))

    return dict(
        w0=w0.astype(compute_dtype), b0=b0,
        w1=w1.astype(compute_dtype), b1=b1,
        w2=w2.astype(compute_dtype), b2=b2,
        wf=wf.astype(compute_dtype), bf=bf,   # bf kept f32
    )


def _choose_batch_tile(batch, batch_tile=None, max_tile=4096, split_threshold=512):
    """Batch tile: multiple of 16 (bf16 sublane packing); single tile for small
    batches (minimal grid overhead on v5e/v6e), an even number of tiles for
    larger batches so the v7x megacore can shard the "parallel" batch axis."""
    if batch_tile is not None:
        tb = min(batch_tile, batch)
    elif batch < split_threshold:
        tb = batch
    else:
        n_tiles = max(2, pl.cdiv(batch, max_tile))
        if n_tiles % 2:
            n_tiles += 1
        tb = pl.cdiv(batch, n_tiles)
    return max(16, _round_up(tb, 16))


def nbeats_block_basis(x, p, *, batch_tile=None, out_dtype=jnp.float32):
    """Runs the fused N-BEATS block; returns the contiguous basis slab
    (padded_batch, basis_size) plus the true batch size (no post-kernel copies).
    """
    batch, input_size = x.shape
    hidden = p["w0"].shape[1]
    basis_size = p["wf"].shape[1]

    tb = _choose_batch_tile(batch, batch_tile)
    padded_batch = pl.cdiv(batch, tb) * tb

    x_in = x
    if padded_batch != batch:
        # Pad only when strictly needed (choose batch % 16 == 0 to avoid it).
        x_in = jnp.pad(x, ((0, padded_batch - batch), (0, 0)))

    grid = (padded_batch // tb,)
    row = lambda i: (i, 0)        # x / basis tiles advance with the grid
    const = lambda i: (0, 0)      # weights & biases stay VMEM-resident

    flops = 2 * padded_batch * (input_size * hidden
                                + 2 * hidden * hidden
                                + hidden * basis_size)
    bytes_accessed = (x_in.size * x_in.dtype.itemsize
                      + sum(int(v.size) * v.dtype.itemsize for v in p.values())
                      + padded_batch * basis_size * jnp.dtype(out_dtype).itemsize)

    basis = pl.pallas_call(
        _nbeats_kernel,
        out_shape=jax.ShapeDtypeStruct((padded_batch, basis_size), out_dtype),
        grid_spec=pltpu.PrefetchScalarGridSpec(
            num_scalar_prefetch=0,
            grid=grid,
            in_specs=[
                pl.BlockSpec((tb, input_size), row),
                pl.BlockSpec(p["w0"].shape, const), pl.BlockSpec(p["b0"].shape, const),
                pl.BlockSpec(p["w1"].shape, const), pl.BlockSpec(p["b1"].shape, const),
                pl.BlockSpec(p["w2"].shape, const), pl.BlockSpec(p["b2"].shape, const),
                pl.BlockSpec(p["wf"].shape, const), pl.BlockSpec(p["bf"].shape, const),
            ],
            out_specs=pl.BlockSpec((tb, basis_size), row),
        ),
        compiler_params=pltpu.CompilerParams(
            dimension_semantics=("parallel",),   # megacore-shard batch tiles on v7x
        ),
        cost_estimate=pl.CostEstimate(
            flops=flops, transcendentals=0, bytes_accessed=bytes_accessed),
    )(x_in,
      p["w0"], p["b0"], p["w1"], p["b1"], p["w2"], p["b2"], p["wf"], p["bf"])
    return basis, batch


@functools.partial(jax.jit, static_argnames=("batch_tile",))
def nbeats_block_forward(x, prepared_params, *, batch_tile=None):
    """N-BEATS block forward on prepared params.

    Returns (forecast, backcast), each (batch, basis_size // 2).  The un-pad
    and the 50/50 split run inside this jit so XLA fuses them with the kernel
    output; callers that keep computing should stay inside the same jit (or use
    nbeats_block_basis directly) to avoid any extra HBM passes.
    """
    basis, batch = nbeats_block_basis(x, prepared_params, batch_tile=batch_tile)
    if basis.shape[0] != batch:
        basis = basis[:batch]
    fs = basis.shape[-1] // 2
    return basis[:, :fs], basis[:, fs:]


def init_params(key, input_size, theta_size, basis_size, hidden_size):
    """Deterministic PyTorch-Linear-style init; weights stored as (in, out)."""
    sizes = [(input_size, hidden_size),
             (hidden_size, hidden_size),
             (hidden_size, hidden_size),
             (hidden_size, theta_size),
             (theta_size, basis_size)]
    names = ["0", "1", "2", "3", "b"]
    params = {}
    for (fan_in, fan_out), name in zip(sizes, names):
        key, kw, kb = jax.random.split(key, 3)
        bound = 1.0 / jnp.sqrt(fan_in)
        params[f"w{name}"] = jax.random.uniform(
            kw, (fan_in, fan_out), jnp.float32, -bound, bound)
        params[f"b{name}"] = jax.random.uniform(
            kb, (1, fan_out), jnp.float32, -bound, bound)
    return params


def nbeats_block_ref(x, params):
    """Pure-JAX f32 reference matching the PyTorch module (eval mode)."""
    h = jnp.maximum(x @ params["w0"] + params["b0"], 0.0)
    h = jnp.maximum(h @ params["w1"] + params["b1"], 0.0)
    h = jnp.maximum(h @ params["w2"] + params["b2"], 0.0)
    theta = h @ params["w3"] + params["b3"]
    basis = theta @ params["wb"] + params["bb"]
    fs = basis.shape[-1] // 2
    return basis[..., :fs], basis[..., fs:]


def nbeats_block_ref_prepared(x, p):
    """Pure-JAX reference using the same fused / padded / bf16-cast params."""
    cd = p["w0"].dtype
    h = jnp.maximum(jnp.dot(x.astype(cd), p["w0"],
                            preferred_element_type=jnp.float32) + p["b0"], 0.0)
    h = jnp.maximum(jnp.dot(h.astype(cd), p["w1"],
                            preferred_element_type=jnp.float32) + p["b1"], 0.0)
    h = jnp.maximum(jnp.dot(h.astype(cd), p["w2"],
                            preferred_element_type=jnp.float32) + p["b2"], 0.0)
    basis = jnp.dot(h.astype(cd), p["wf"],
                    preferred_element_type=jnp.float32) + p["bf"]
    fs = basis.shape[-1] // 2
    return basis[..., :fs], basis[..., fs:]


if __name__ == "__main__":
    # Small shapes consistent with NBEATSBlock(input_size, theta_size, basis_size)
    batch = 8
    input_size = 128
    theta_size = 32
    basis_size = 32       # forecast/backcast each get 16
    hidden_size = 64      # (num_layers=4 -> 3 hidden layers + theta layer)

    key = jax.random.PRNGKey(0)
    key, kx = jax.random.split(key)
    x = jax.random.normal(kx, (batch, input_size), jnp.float32)
    params = init_params(key, input_size, theta_size, basis_size, hidden_size)

    # One-time preparation (fusion, hidden padding, bf16 casts) -- hoisted out
    # of the per-call path.
    prepared = prepare_params(params)
    prepared = jax.tree_util.tree_map(lambda a: jax.device_put(a), prepared)

    forecast, backcast = nbeats_block_forward(x, prepared)
    jax.block_until_ready((forecast, backcast))

    assert forecast.shape == (batch, basis_size // 2)
    assert backcast.shape == (batch, basis_size - basis_size // 2)

    # Tight check: kernel vs a reference using identical fused/padded/bf16 params.
    f_ref, b_ref = nbeats_block_ref_prepared(x, prepared)
    assert jnp.allclose(forecast, f_ref, atol=1e-3, rtol=1e-3)
    assert jnp.allclose(backcast, b_ref, atol=1e-3, rtol=1e-3)

    # Loose check: against the full-precision module semantics (bf16 weight
    # quantization introduces ~0.5% error; fusion and hidden padding are exact).
    f32_f, f32_b = nbeats_block_ref(x, params)
    assert jnp.allclose(forecast, f32_f, atol=5e-2, rtol=5e-2)
    assert jnp.allclose(backcast, f32_b, atol=5e-2, rtol=5e-2)

    print("KERNEL_OK")
</pallas_src>

<mosaic_0001>
module attributes {stable_mosaic.version = 11 : i64} {
  func.func @_nbeats_kernel(%arg0: i32, %arg1: memref<16x128xf32, #tpu.memory_space<vmem>>, %arg2: memref<128x128xbf16, #tpu.memory_space<vmem>>, %arg3: memref<1x128xf32, #tpu.memory_space<vmem>>, %arg4: memref<128x128xbf16, #tpu.memory_space<vmem>>, %arg5: memref<1x128xf32, #tpu.memory_space<vmem>>, %arg6: memref<128x128xbf16, #tpu.memory_space<vmem>>, %arg7: memref<1x128xf32, #tpu.memory_space<vmem>>, %arg8: memref<128x32xbf16, #tpu.memory_space<vmem>>, %arg9: memref<1x32xf32, #tpu.memory_space<vmem>>, %arg10: memref<16x32xf32, #tpu.memory_space<vmem>>) attributes {dimension_semantics = [#tpu.dimension_semantics<parallel>], iteration_bounds = array<i64: 1>, scalar_prefetch = 0 : i64, scratch_operands = 0 : i64, tpu.core_type = #tpu.core_type<tc>, window_params = [{transform_indices = @transform_0, window_bounds = array<i64: 16, 128>}, {pipeline_mode = #tpu.pipeline_mode<synchronous>, transform_indices = @transform_1, window_bounds = array<i64: 128, 128>}, {pipeline_mode = #tpu.pipeline_mode<synchronous>, transform_indices = @transform_2, window_bounds = array<i64: 1, 128>}, {pipeline_mode = #tpu.pipeline_mode<synchronous>, transform_indices = @transform_3, window_bounds = array<i64: 128, 128>}, {pipeline_mode = #tpu.pipeline_mode<synchronous>, transform_indices = @transform_4, window_bounds = array<i64: 1, 128>}, {pipeline_mode = #tpu.pipeline_mode<synchronous>, transform_indices = @transform_5, window_bounds = array<i64: 128, 128>}, {pipeline_mode = #tpu.pipeline_mode<synchronous>, transform_indices = @transform_6, window_bounds = array<i64: 1, 128>}, {pipeline_mode = #tpu.pipeline_mode<synchronous>, transform_indices = @transform_7, window_bounds = array<i64: 128, 32>}, {pipeline_mode = #tpu.pipeline_mode<synchronous>, transform_indices = @transform_8, window_bounds = array<i64: 1, 32>}, {transform_indices = @transform_9, window_bounds = array<i64: 16, 32>}]} {
    %c0 = arith.constant 0 : index
    %c0_0 = arith.constant 0 : index
    %0 = vector.load %arg1[%c0, %c0_0] : memref<16x128xf32, #tpu.memory_space<vmem>>, vector<16x128xf32>
    %1 = arith.truncf %0 : vector<16x128xf32> to vector<16x128xbf16>
    %c0_1 = arith.constant 0 : index
    %c0_2 = arith.constant 0 : index
    %2 = vector.load %arg2[%c0_1, %c0_2] : memref<128x128xbf16, #tpu.memory_space<vmem>>, vector<128x128xbf16>
    %cst = arith.constant dense<0.000000e+00> : vector<16x128xf32>
    %3 = tpu.matmul %1, %2, %cst {dimension_numbers = #tpu.dot_dimension_numbers<[1], [0], [0], [1], [0, 0, 1, 1], [], []>} : vector<16x128xbf16>, vector<128x128xbf16>, vector<16x128xf32> -> vector<16x128xf32>
    %c0_3 = arith.constant 0 : index
    %c0_4 = arith.constant 0 : index
    %4 = vector.load %arg3[%c0_3, %c0_4] : memref<1x128xf32, #tpu.memory_space<vmem>>, vector<1x128xf32>
    %5 = vector.broadcast %4 : vector<1x128xf32> to vector<16x128xf32>
    %6 = arith.addf %3, %5 : vector<16x128xf32>
    %cst_5 = arith.constant 0.000000e+00 : f32
    %7 = vector.broadcast %cst_5 : f32 to vector<16x128xf32>
    %8 = arith.maximumf %6, %7 : vector<16x128xf32>
    %9 = arith.truncf %8 : vector<16x128xf32> to vector<16x128xbf16>
    %c0_6 = arith.constant 0 : index
    %c0_7 = arith.constant 0 : index
    %10 = vector.load %arg4[%c0_6, %c0_7] : memref<128x128xbf16, #tpu.memory_space<vmem>>, vector<128x128xbf16>
    %cst_8 = arith.constant dense<0.000000e+00> : vector<16x128xf32>
    %11 = tpu.matmul %9, %10, %cst_8 {dimension_numbers = #tpu.dot_dimension_numbers<[1], [0], [0], [1], [0, 0, 1, 1], [], []>} : vector<16x128xbf16>, vector<128x128xbf16>, vector<16x128xf32> -> vector<16x128xf32>
    %c0_9 = arith.constant 0 : index
    %c0_10 = arith.constant 0 : index
    %12 = vector.load %arg5[%c0_9, %c0_10] : memref<1x128xf32, #tpu.memory_space<vmem>>, vector<1x128xf32>
    %13 = vector.broadcast %12 : vector<1x128xf32> to vector<16x128xf32>
    %14 = arith.addf %11, %13 : vector<16x128xf32>
    %cst_11 = arith.constant 0.000000e+00 : f32
    %15 = vector.broadcast %cst_11 : f32 to vector<16x128xf32>
    %16 = arith.maximumf %14, %15 : vector<16x128xf32>
    %17 = arith.truncf %16 : vector<16x128xf32> to vector<16x128xbf16>
    %c0_12 = arith.constant 0 : index
    %c0_13 = arith.constant 0 : index
    %18 = vector.load %arg6[%c0_12, %c0_13] : memref<128x128xbf16, #tpu.memory_space<vmem>>, vector<128x128xbf16>
    %cst_14 = arith.constant dense<0.000000e+00> : vector<16x128xf32>
    %19 = tpu.matmul %17, %18, %cst_14 {dimension_numbers = #tpu.dot_dimension_numbers<[1], [0], [0], [1], [0, 0, 1, 1], [], []>} : vector<16x128xbf16>, vector<128x128xbf16>, vector<16x128xf32> -> vector<16x128xf32>
    %c0_15 = arith.constant 0 : index
    %c0_16 = arith.constant 0 : index
    %20 = vector.load %arg7[%c0_15, %c0_16] : memref<1x128xf32, #tpu.memory_space<vmem>>, vector<1x128xf32>
    %21 = vector.broadcast %20 : vector<1x128xf32> to vector<16x128xf32>
    %22 = arith.addf %19, %21 : vector<16x128xf32>
    %cst_17 = arith.constant 0.000000e+00 : f32
    %23 = vector.broadcast %cst_17 : f32 to vector<16x128xf32>
    %24 = arith.maximumf %22, %23 : vector<16x128xf32>
    %25 = arith.truncf %24 : vector<16x128xf32> to vector<16x128xbf16>
    %c0_18 = arith.constant 0 : index
    %c0_19 = arith.constant 0 : index
    %26 = vector.load %arg8[%c0_18, %c0_19] : memref<128x32xbf16, #tpu.memory_space<vmem>>, vector<128x32xbf16>
    %cst_20 = arith.constant dense<0.000000e+00> : vector<16x32xf32>
    %27 = tpu.matmul %25, %26, %cst_20 {dimension_numbers = #tpu.dot_dimension_numbers<[1], [0], [0], [1], [0, 0, 1, 1], [], []>} : vector<16x128xbf16>, vector<128x32xbf16>, vector<16x32xf32> -> vector<16x32xf32>
    %c0_21 = arith.constant 0 : index
    %c0_22 = arith.constant 0 : index
    %28 = vector.load %arg9[%c0_21, %c0_22] : memref<1x32xf32, #tpu.memory_space<vmem>>, vector<1x32xf32>
    %29 = vector.broadcast %28 : vector<1x32xf32> to vector<16x32xf32>
    %30 = arith.addf %27, %29 : vector<16x32xf32>
    %c0_23 = arith.constant 0 : index
    %c0_24 = arith.constant 0 : index
    %31 = vector.load %arg10[%c0_23, %c0_24] : memref<16x32xf32, #tpu.memory_space<vmem>>, vector<16x32xf32>
    tpu.vector_store %arg10[%c0_23, %c0_24], %30 {strides = array<i32>} : memref<16x32xf32, #tpu.memory_space<vmem>>, vector<16x32xf32>,
    return
  }
  func.func @transform_0(%arg0: i32) -> (i32, i32) {
    %c0_i32 = arith.constant 0 : i32
    %c0_i32_0 = arith.constant 0 : i32
    return %arg0, %c0_i32 : i32, i32
  }
  func.func @transform_1(%arg0: i32) -> (i32, i32) {
    %c0_i32 = arith.constant 0 : i32
    %c0_i32_0 = arith.constant 0 : i32
    %c0_i32_1 = arith.constant 0 : i32
    return %c0_i32, %c0_i32_0 : i32, i32
  }
  func.func @transform_2(%arg0: i32) -> (i32, i32) {
    %c0_i32 = arith.constant 0 : i32
    %c0_i32_0 = arith.constant 0 : i32
    %c0_i32_1 = arith.constant 0 : i32
    return %c0_i32, %c0_i32_0 : i32, i32
  }
  func.func @transform_3(%arg0: i32) -> (i32, i32) {
    %c0_i32 = arith.constant 0 : i32
    %c0_i32_0 = arith.constant 0 : i32
    %c0_i32_1 = arith.constant 0 : i32
    return %c0_i32, %c0_i32_0 : i32, i32
  }
  func.func @transform_4(%arg0: i32) -> (i32, i32) {
    %c0_i32 = arith.constant 0 : i32
    %c0_i32_0 = arith.constant 0 : i32
    %c0_i32_1 = arith.constant 0 : i32
    return %c0_i32, %c0_i32_0 : i32, i32
  }
  func.func @transform_5(%arg0: i32) -> (i32, i32) {
    %c0_i32 = arith.constant 0 : i32
    %c0_i32_0 = arith.constant 0 : i32
    %c0_i32_1 = arith.constant 0 : i32
    return %c0_i32, %c0_i32_0 : i32, i32
  }
  func.func @transform_6(%arg0: i32) -> (i32, i32) {
    %c0_i32 = arith.constant 0 : i32
    %c0_i32_0 = arith.constant 0 : i32
    %c0_i32_1 = arith.constant 0 : i32
    return %c0_i32, %c0_i32_0 : i32, i32
  }
  func.func @transform_7(%arg0: i32) -> (i32, i32) {
    %c0_i32 = arith.constant 0 : i32
    %c0_i32_0 = arith.constant 0 : i32
    %c0_i32_1 = arith.constant 0 : i32
    return %c0_i32, %c0_i32_0 : i32, i32
  }
  func.func @transform_8(%arg0: i32) -> (i32, i32) {
    %c0_i32 = arith.constant 0 : i32
    %c0_i32_0 = arith.constant 0 : i32
    %c0_i32_1 = arith.constant 0 : i32
    return %c0_i32, %c0_i32_0 : i32, i32
  }
  func.func @transform_9(%arg0: i32) -> (i32, i32) {
    %c0_i32 = arith.constant 0 : i32
    %c0_i32_0 = arith.constant 0 : i32
    return %arg0, %c0_i32 : i32, i32
  }
}

</mosaic_0001>

<llo_original>
// kernel: nbeats_block_forward.1
$region0: #{nbeats_block_forward.1}
  #allocation0 [shape = 'u32[]', space=smem, size = 0x4, offset = 0x4, fixed_abs, tag = 'smem constant byte address 0x4 - core index']
  #allocation1 [shape = 'u32[144,128]{1,0:T(1,128)}', space=vmem, size = 0x12000, scoped, tag = 'internal scratch']
  %s0 = inlined_call_operand.vmem [shape: f32[16,128], index: 0, kind: input, shape index: {}]
  %s1 = inlined_call_operand.vmem [shape: bf16[128,128], index: 1, kind: input, shape index: {}]
  %s2 = inlined_call_operand.vmem [shape: f32[1,128], index: 2, kind: input, shape index: {}]
  %s3 = inlined_call_operand.hbm [shape: bf16[128,128], index: 3, kind: input, shape index: {}]
  %s4 = inlined_call_operand.vmem [shape: f32[1,128], index: 4, kind: input, shape index: {}]
  %s5 = inlined_call_operand.vmem [shape: bf16[128,128], index: 5, kind: input, shape index: {}]
  %s6 = inlined_call_operand.vmem [shape: f32[1,128], index: 6, kind: input, shape index: {}]
  %s7 = inlined_call_operand.vmem [shape: bf16[128,32], index: 7, kind: input, shape index: {}]
  %s8 = inlined_call_operand.hbm [shape: f32[1,32], index: 8, kind: input, shape index: {}]
  %s9 = inlined_call_operand.vmem [shape: f32[16,32], index: 9, kind: output, shape index: {}]
  %s10 = sld [smem:[#allocation0]]
  $region54: #{nbeats_block_forward.1} parent=0
    _
  %s12 = ssub.s32 1, %s10
  %s13 = scalar_select 0, %s12, %s10
  $region1: #{nbeats_block_forward.1} parent=0
    #allocation2 [shape = 'u8[32768]{0}', space=vmem, size = 0x8000, scoped, tag = 'input window, operand 3, single buffered']
    #allocation3 [shape = 's32[1]{0}', space=sflag, size = 0x4, scoped, tag = 'scoped memory for nbeats_block_forward.1']
    #allocation4 [shape = 'u8[512]{0}', space=vmem, size = 0x400, scoped, tag = 'input window, operand 8, single buffered']
    #allocation5 [shape = 's32[1]{0}', space=sflag, size = 0x4, scoped, tag = 'scoped memory for nbeats_block_forward.1']
    %14 = vsyncpa [#allocation3], 0
    %15 = vsyncpa [#allocation5], 0
    // Predicated region
    $region2: #{nbeats_block_forward.1} parent=1 // pred_check
      _
    $region3: #{nbeats_block_forward.1} parent=1 // pred_check_branch
      %17 = sbr.rel (0) target = $region5
    $region4: #{nbeats_block_forward.1} parent=1 // pred_region
      _
    $region5: #{nbeats_block_forward.1} parent=1 // pred_fallthru
      _
    // Predicated region
    $region6: #{nbeats_block_forward.1} parent=1 // pred_check
      _
    $region7: #{nbeats_block_forward.1} parent=1 // pred_check_branch
      %19 = sbr.rel (0) target = $region9
    $region8: #{nbeats_block_forward.1} parent=1 // pred_region
      _
    $region9: #{nbeats_block_forward.1} parent=1 // pred_fallthru
      _
    // Predicated region
    $region10: #{nbeats_block_forward.1} parent=1 // pred_check
      _
    $region11: #{nbeats_block_forward.1} parent=1 // pred_check_branch
      %21 = sbr.rel (0) target = $region13
    $region12: #{nbeats_block_forward.1} parent=1 // pred_region
      _
    $region13: #{nbeats_block_forward.1} parent=1 // pred_fallthru
      _
    // Predicated region
    $region14: #{nbeats_block_forward.1} parent=1 // pred_check
      _
    $region15: #{nbeats_block_forward.1} parent=1 // pred_check_branch
      %23 = sbr.rel (0) target = $region17
    $region16: #{nbeats_block_forward.1} parent=1 // pred_region
      %s25 = ssub.s32 1024, 1024
      %26 = vsyncadd [#allocation3], %s25
      %s27 = sshll.u32 [#allocation2], 4
      %s28 = int_to_ptr.vmem [resolvable:$true] %s27
      %33 = dma.hbm_to_vmem [thread:$0]  %s3, 1024, %s28, [#allocation3], 64, 64, 4
    $region17: #{nbeats_block_forward.1} parent=1 // pred_fallthru
      _
    // Predicated region
    $region18: #{nbeats_block_forward.1} parent=1 // pred_check
      _
    $region19: #{nbeats_block_forward.1} parent=1 // pred_check_branch
      %35 = sbr.rel (0) target = $region21
    $region20: #{nbeats_block_forward.1} parent=1 // pred_region
      _
    $region21: #{nbeats_block_forward.1} parent=1 // pred_fallthru
      _
    // Predicated region
    $region22: #{nbeats_block_forward.1} parent=1 // pred_check
      _
    $region23: #{nbeats_block_forward.1} parent=1 // pred_check_branch
      %37 = sbr.rel (0) target = $region25
    $region24: #{nbeats_block_forward.1} parent=1 // pred_region
      _
    $region25: #{nbeats_block_forward.1} parent=1 // pred_fallthru
      _
    // Predicated region
    $region26: #{nbeats_block_forward.1} parent=1 // pred_check
      _
    $region27: #{nbeats_block_forward.1} parent=1 // pred_check_branch
      %39 = sbr.rel (0) target = $region29
    $region28: #{nbeats_block_forward.1} parent=1 // pred_region
      _
    $region29: #{nbeats_block_forward.1} parent=1 // pred_fallthru
      _
    // Predicated region
    $region30: #{nbeats_block_forward.1} parent=1 // pred_check
      _
    $region31: #{nbeats_block_forward.1} parent=1 // pred_check_branch
      %41 = sbr.rel (0) target = $region33
    $region32: #{nbeats_block_forward.1} parent=1 // pred_region
      _
    $region33: #{nbeats_block_forward.1} parent=1 // pred_fallthru
      _
    // Predicated region
    $region34: #{nbeats_block_forward.1} parent=1 // pred_check
      _
    $region35: #{nbeats_block_forward.1} parent=1 // pred_check_branch
      %43 = sbr.rel (0) target = $region37
    $region36: #{nbeats_block_forward.1} parent=1 // pred_region
      %s45 = ssub.s32 16, 16
      %46 = vsyncadd [#allocation5], %s45
      %s48 = sshll.u32 [#allocation4], 4
      %s49 = int_to_ptr.vmem [resolvable:$true] %s48
      %51 = dma.hbm_to_vmem [thread:$0]  %s8, 16, %s49, [#allocation5]
    $region37: #{nbeats_block_forward.1} parent=1 // pred_fallthru
      _
    // Predicated region
    $region38: #{nbeats_block_forward.1} parent=1 // pred_check
      _
    $region39: #{nbeats_block_forward.1} parent=1 // pred_check_branch
      %53 = sbr.rel (0) target = $region41
    $region40: #{nbeats_block_forward.1} parent=1 // pred_region
      %54 = dma.done [#allocation3], 1024
    $region41: #{nbeats_block_forward.1} parent=1 // pred_fallthru
      _
    // Predicated region
    $region42: #{nbeats_block_forward.1} parent=1 // pred_check
      _
    $region43: #{nbeats_block_forward.1} parent=1 // pred_check_branch
      %56 = sbr.rel (0) target = $region45
    $region44: #{nbeats_block_forward.1} parent=1 // pred_region
      %57 = dma.done [#allocation5], 16
    $region45: #{nbeats_block_forward.1} parent=1 // pred_fallthru
      _
    %v59 = vld [vmem:[%s0] sm:$0xff]
    %v60 = vld [vmem:[%s0 + $0x8] sm:$0xff]
    %v61 = vpack.c.bf16 %v60, %v59
    %v62 = vld [vmem:[%s1] sm:$0xf]
    %v63 = vld [vmem:[%s1 + $0x4] sm:$0xf]
    %v64 = vld [vmem:[%s1 + $0x8] sm:$0xf]
    %v65 = vld [vmem:[%s1 + $0xc] sm:$0xf]
    %v66 = vld [vmem:[%s1 + $0x10] sm:$0xf]
    %v67 = vld [vmem:[%s1 + $0x14] sm:$0xf]
    %v68 = vld [vmem:[%s1 + $0x18] sm:$0xf]
    %v69 = vld [vmem:[%s1 + $0x1c] sm:$0xf]
    %v70 = vld [vmem:[%s1 + $0x20] sm:$0xf]
    %v71 = vld [vmem:[%s1 + $0x24] sm:$0xf]
    %v72 = vld [vmem:[%s1 + $0x28] sm:$0xf]
    %v73 = vld [vmem:[%s1 + $0x2c] sm:$0xf]
    %v74 = vld [vmem:[%s1 + $0x30] sm:$0xf]
    %v75 = vld [vmem:[%s1 + $0x34] sm:$0xf]
    %v76 = vld [vmem:[%s1 + $0x38] sm:$0xf]
    %v77 = vld [vmem:[%s1 + $0x3c] sm:$0xf]
    %v78 = vld [vmem:[%s2] sm:$0x1]
    %v80 = vlaneseq
    %v81 = vshrl.u32 %v80, 7
    %v82 = vsub.s32 0, %v81
    %v83 = vrot.slane %v78, %v82
    %v101 = vunpack.c.l.b16 %v62
    %v102 = vunpack.c.l.b16 %v63
    %v103 = vunpack.c.l.b16 %v64
    %v104 = vunpack.c.l.b16 %v65
    %v105 = vunpack.c.l.b16 %v66
    %v106 = vunpack.c.l.b16 %v67
    %v107 = vunpack.c.l.b16 %v68
    %v108 = vunpack.c.l.b16 %v69
    %v109 = vunpack.c.l.b16 %v70
    %v110 = vunpack.c.l.b16 %v71
    %v111 = vunpack.c.l.b16 %v72
    %v112 = vunpack.c.l.b16 %v73
    %v113 = vunpack.c.l.b16 %v74
    %v114 = vunpack.c.l.b16 %v75
    %v115 = vunpack.c.l.b16 %v76
    %v116 = vunpack.c.l.b16 %v77
    %v117 = vpack.c.b16 %v102, %v101
    %v118 = vpack.c.b16 %v104, %v103
    %v119 = vpack.c.b16 %v106, %v105
    %v120 = vpack.c.b16 %v108, %v107
    %v121 = vpack.c.b16 %v110, %v109
    %v122 = vpack.c.b16 %v112, %v111
    %v123 = vpack.c.b16 %v114, %v113
    %v124 = vpack.c.b16 %v116, %v115
    %133 = vmatprep.subr.bf16.mxu0 0
    %134 = vmatpush1.bf16.msra.mxu0 %v117
    %135 = vmatprep.subr.bf16.mxu0 0
    %136 = vmatpush1.bf16.msra.mxu0 %v118
    %137 = vmatprep.subr.bf16.mxu0 0
    %138 = vmatpush1.bf16.msra.mxu0 %v119
    %139 = vmatprep.subr.bf16.mxu0 0
    %140 = vmatpush1.bf16.msra.mxu0 %v120
    %141 = vmatprep.subr.bf16.mxu0 0
    %142 = vmatpush1.bf16.msra.mxu0 %v121
    %143 = vmatprep.subr.bf16.mxu0 0
    %144 = vmatpush1.bf16.msra.mxu0 %v122
    %145 = vmatprep.subr.bf16.mxu0 0
    %146 = vmatpush1.bf16.msra.mxu0 %v123
    %147 = vmatprep.subr.bf16.mxu0 0
    %148 = vmatpush1.bf16.msra.mxu0 %v124
    %149 = vmatprep.subr.bf16.mxu0 0
    %150 = vmatpush1.bf16.msra.mxu0 0
    %151 = vmatprep.subr.bf16.mxu0 0
    %152 = vmatpush1.bf16.msra.mxu0 0
    %153 = vmatprep.subr.bf16.mxu0 0
    %154 = vmatpush1.bf16.msra.mxu0 0
    %155 = vmatprep.subr.bf16.mxu0 0
    %156 = vmatpush1.bf16.msra.mxu0 0
    %157 = vmatprep.subr.bf16.mxu0 0
    %158 = vmatpush1.bf16.msra.mxu0 0
    %159 = vmatprep.subr.bf16.mxu0 0
    %160 = vmatpush1.bf16.msra.mxu0 0
    %161 = vmatprep.subr.bf16.mxu0 0
    %162 = vmatpush1.bf16.msra.mxu0 0
    %163 = vmatprep.subr.bf16.mxu0 0
    %164 = vmatpush1.bf16.msra.mxu0 0
    %165 = vmatprep.mubr.bf16.mxu0 0
    %166 = vmatmul.mubr.bf16.gmra.mrb[0].mxu0 %v61
    %v167 = vpop.f32.mrb[0].mxu0
    %v168 = vadd.f32 %v83, %v167
    %v169 = vpop.f32.mrb[0].mxu0
    %v170 = vpop.f32.mrb[0].mxu0
    %v171 = vadd.f32 %v83, %v170
    %v172 = vpop.f32.mrb[0].mxu0
    %173 = vdwg.mxu0
    %v174 = vmax.f32 %v168, 0.0
    %v175 = vmax.f32 %v171, 0.0
    %v176 = vpack.c.bf16 %v175, %v174
    %v177 = vld [vmem:[#allocation2] sm:$0xf]
    %v178 = vld [vmem:[#allocation2 + $0x4] sm:$0xf]
    %v179 = vld [vmem:[#allocation2 + $0x8] sm:$0xf]
    %v180 = vld [vmem:[#allocation2 + $0xc] sm:$0xf]
    %v181 = vld [vmem:[#allocation2 + $0x10] sm:$0xf]
    %v182 = vld [vmem:[#allocation2 + $0x14] sm:$0xf]
    %v183 = vld [vmem:[#allocation2 + $0x18] sm:$0xf]
    %v184 = vld [vmem:[#allocation2 + $0x1c] sm:$0xf]
    %v185 = vld [vmem:[#allocation2 + $0x20] sm:$0xf]
    %v186 = vld [vmem:[#allocation2 + $0x24] sm:$0xf]
    %v187 = vld [vmem:[#allocation2 + $0x28] sm:$0xf]
    %v188 = vld [vmem:[#allocation2 + $0x2c] sm:$0xf]
    %v189 = vld [vmem:[#allocation2 + $0x30] sm:$0xf]
    %v190 = vld [vmem:[#allocation2 + $0x34] sm:$0xf]
    %v191 = vld [vmem:[#allocation2 + $0x38] sm:$0xf]
    %v192 = vld [vmem:[#allocation2 + $0x3c] sm:$0xf]
    %v193 = vld [vmem:[%s4] sm:$0x1]
    %v195 = vlaneseq
    %v196 = vshrl.u32 %v195, 7
    %v197 = vsub.s32 0, %v196
    %v198 = vrot.slane %v193, %v197
    %v216 = vunpack.c.l.b16 %v177
    %v217 = vunpack.c.l.b16 %v178
    %v218 = vunpack.c.l.b16 %v179
    %v219 = vunpack.c.l.b16 %v180
    %v220 = vunpack.c.l.b16 %v181
    %v221 = vunpack.c.l.b16 %v182
    %v222 = vunpack.c.l.b16 %v183
    %v223 = vunpack.c.l.b16 %v184
    %v224 = vunpack.c.l.b16 %v185
    %v225 = vunpack.c.l.b16 %v186
    %v226 = vunpack.c.l.b16 %v187
    %v227 = vunpack.c.l.b16 %v188
    %v228 = vunpack.c.l.b16 %v189
    %v229 = vunpack.c.l.b16 %v190
    %v230 = vunpack.c.l.b16 %v191
    %v231 = vunpack.c.l.b16 %v192
    %v232 = vpack.c.b16 %v217, %v216
    %v233 = vpack.c.b16 %v219, %v218
    %v234 = vpack.c.b16 %v221, %v220
    %v235 = vpack.c.b16 %v223, %v222
    %v236 = vpack.c.b16 %v225, %v224
    %v237 = vpack.c.b16 %v227, %v226
    %v238 = vpack.c.b16 %v229, %v228
    %v239 = vpack.c.b16 %v231, %v230
    %248 = vmatprep.subr.bf16.mxu0 0
    %249 = vmatpush1.bf16.msra.mxu0 %v232
    %250 = vmatprep.subr.bf16.mxu0 0
    %251 = vmatpush1.bf16.msra.mxu0 %v233
    %252 = vmatprep.subr.bf16.mxu0 0
    %253 = vmatpush1.bf16.msra.mxu0 %v234
    %254 = vmatprep.subr.bf16.mxu0 0
    %255 = vmatpush1.bf16.msra.mxu0 %v235
    %256 = vmatprep.subr.bf16.mxu0 0
    %257 = vmatpush1.bf16.msra.mxu0 %v236
    %258 = vmatprep.subr.bf16.mxu0 0
    %259 = vmatpush1.bf16.msra.mxu0 %v237
    %260 = vmatprep.subr.bf16.mxu0 0
    %261 = vmatpush1.bf16.msra.mxu0 %v238
    %262 = vmatprep.subr.bf16.mxu0 0
    %263 = vmatpush1.bf16.msra.mxu0 %v239
    %264 = vmatprep.subr.bf16.mxu0 0
    %265 = vmatpush1.bf16.msra.mxu0 0
    %266 = vmatprep.subr.bf16.mxu0 0
    %267 = vmatpush1.bf16.msra.mxu0 0
    %268 = vmatprep.subr.bf16.mxu0 0
    %269 = vmatpush1.bf16.msra.mxu0 0
    %270 = vmatprep.subr.bf16.mxu0 0
    %271 = vmatpush1.bf16.msra.mxu0 0
    %272 = vmatprep.subr.bf16.mxu0 0
    %273 = vmatpush1.bf16.msra.mxu0 0
    %274 = vmatprep.subr.bf16.mxu0 0
    %275 = vmatpush1.bf16.msra.mxu0 0
    %276 = vmatprep.subr.bf16.mxu0 0
    %277 = vmatpush1.bf16.msra.mxu0 0
    %278 = vmatprep.subr.bf16.mxu0 0
    %279 = vmatpush1.bf16.msra.mxu0 0
    %280 = vmatprep.mubr.bf16.mxu0 0
    %281 = vmatmul.mubr.bf16.gmra.mrb[0].mxu0 %v176
    %v282 = vpop.f32.mrb[0].mxu0
    %v283 = vadd.f32 %v198, %v282
    %v284 = vpop.f32.mrb[0].mxu0
    %v285 = vpop.f32.mrb[0].mxu0
    %v286 = vadd.f32 %v198, %v285
    %v287 = vpop.f32.mrb[0].mxu0
    %288 = vdwg.mxu0
    %v289 = vmax.f32 %v283, 0.0
    %v290 = vmax.f32 %v286, 0.0
    %v291 = vpack.c.bf16 %v290, %v289
    %v292 = vld [vmem:[%s5] sm:$0xf]
    %v293 = vld [vmem:[%s5 + $0x4] sm:$0xf]
    %v294 = vld [vmem:[%s5 + $0x8] sm:$0xf]
    %v295 = vld [vmem:[%s5 + $0xc] sm:$0xf]
    %v296 = vld [vmem:[%s5 + $0x10] sm:$0xf]
    %v297 = vld [vmem:[%s5 + $0x14] sm:$0xf]
    %v298 = vld [vmem:[%s5 + $0x18] sm:$0xf]
    %v299 = vld [vmem:[%s5 + $0x1c] sm:$0xf]
    %v300 = vld [vmem:[%s5 + $0x20] sm:$0xf]
    %v301 = vld [vmem:[%s5 + $0x24] sm:$0xf]
    %v302 = vld [vmem:[%s5 + $0x28] sm:$0xf]
    %v303 = vld [vmem:[%s5 + $0x2c] sm:$0xf]
    %v304 = vld [vmem:[%s5 + $0x30] sm:$0xf]
    %v305 = vld [vmem:[%s5 + $0x34] sm:$0xf]
    %v306 = vld [vmem:[%s5 + $0x38] sm:$0xf]
    %v307 = vld [vmem:[%s5 + $0x3c] sm:$0xf]
    %v308 = vld [vmem:[%s6] sm:$0x1]
    %v310 = vlaneseq
    %v311 = vshrl.u32 %v310, 7
    %v312 = vsub.s32 0, %v311
    %v313 = vrot.slane %v308, %v312
    %v331 = vunpack.c.l.b16 %v292
    %v332 = vunpack.c.l.b16 %v293
    %v333 = vunpack.c.l.b16 %v294
    %v334 = vunpack.c.l.b16 %v295
    %v335 = vunpack.c.l.b16 %v296
    %v336 = vunpack.c.l.b16 %v297
    %v337 = vunpack.c.l.b16 %v298
    %v338 = vunpack.c.l.b16 %v299
    %v339 = vunpack.c.l.b16 %v300
    %v340 = vunpack.c.l.b16 %v301
    %v341 = vunpack.c.l.b16 %v302
    %v342 = vunpack.c.l.b16 %v303
    %v343 = vunpack.c.l.b16 %v304
    %v344 = vunpack.c.l.b16 %v305
    %v345 = vunpack.c.l.b16 %v306
    %v346 = vunpack.c.l.b16 %v307
    %v347 = vpack.c.b16 %v332, %v331
    %v348 = vpack.c.b16 %v334, %v333
    %v349 = vpack.c.b16 %v336, %v335
    %v350 = vpack.c.b16 %v338, %v337
    %v351 = vpack.c.b16 %v340, %v339
    %v352 = vpack.c.b16 %v342, %v341
    %v353 = vpack.c.b16 %v344, %v343
    %v354 = vpack.c.b16 %v346, %v345
    %363 = vmatprep.subr.bf16.mxu0 0
    %364 = vmatpush1.bf16.msra.mxu0 %v347
    %365 = vmatprep.subr.bf16.mxu0 0
    %366 = vmatpush1.bf16.msra.mxu0 %v348
    %367 = vmatprep.subr.bf16.mxu0 0
    %368 = vmatpush1.bf16.msra.mxu0 %v349
    %369 = vmatprep.subr.bf16.mxu0 0
    %370 = vmatpush1.bf16.msra.mxu0 %v350
    %371 = vmatprep.subr.bf16.mxu0 0
    %372 = vmatpush1.bf16.msra.mxu0 %v351
    %373 = vmatprep.subr.bf16.mxu0 0
    %374 = vmatpush1.bf16.msra.mxu0 %v352
    %375 = vmatprep.subr.bf16.mxu0 0
    %376 = vmatpush1.bf16.msra.mxu0 %v353
    %377 = vmatprep.subr.bf16.mxu0 0
    %378 = vmatpush1.bf16.msra.mxu0 %v354
    %379 = vmatprep.subr.bf16.mxu0 0
    %380 = vmatpush1.bf16.msra.mxu0 0
    %381 = vmatprep.subr.bf16.mxu0 0
    %382 = vmatpush1.bf16.msra.mxu0 0
    %383 = vmatprep.subr.bf16.mxu0 0
    %384 = vmatpush1.bf16.msra.mxu0 0
    %385 = vmatprep.subr.bf16.mxu0 0
    %386 = vmatpush1.bf16.msra.mxu0 0
    %387 = vmatprep.subr.bf16.mxu0 0
    %388 = vmatpush1.bf16.msra.mxu0 0
    %389 = vmatprep.subr.bf16.mxu0 0
    %390 = vmatpush1.bf16.msra.mxu0 0
    %391 = vmatprep.subr.bf16.mxu0 0
    %392 = vmatpush1.bf16.msra.mxu0 0
    %393 = vmatprep.subr.bf16.mxu0 0
    %394 = vmatpush1.bf16.msra.mxu0 0
    %395 = vmatprep.mubr.bf16.mxu0 0
    %396 = vmatmul.mubr.bf16.gmra.mrb[0].mxu0 %v291
    %v397 = vpop.f32.mrb[0].mxu0
    %v398 = vadd.f32 %v313, %v397
    %v399 = vpop.f32.mrb[0].mxu0
    %v400 = vpop.f32.mrb[0].mxu0
    %v401 = vadd.f32 %v313, %v400
    %v402 = vpop.f32.mrb[0].mxu0
    %403 = vdwg.mxu0
    %v404 = vmax.f32 %v398, 0.0
    %v405 = vmax.f32 %v401, 0.0
    %v406 = vpack.c.bf16 %v405, %v404
    %v407 = vld [vmem:[%s7] sm:$0xf]
    %v408 = vld [vmem:[%s7 + $0x4] sm:$0xf]
    %v409 = vld [vmem:[%s7 + $0x8] sm:$0xf]
    %v410 = vld [vmem:[%s7 + $0xc] sm:$0xf]
    %v411 = vld [vmem:[%s7 + $0x10] sm:$0xf]
    %v412 = vld [vmem:[%s7 + $0x14] sm:$0xf]
    %v413 = vld [vmem:[%s7 + $0x18] sm:$0xf]
    %v414 = vld [vmem:[%s7 + $0x1c] sm:$0xf]
    %v415 = vld [vmem:[%s7 + $0x20] sm:$0xf]
    %v416 = vld [vmem:[%s7 + $0x24] sm:$0xf]
    %v417 = vld [vmem:[%s7 + $0x28] sm:$0xf]
    %v418 = vld [vmem:[%s7 + $0x2c] sm:$0xf]
    %v419 = vld [vmem:[%s7 + $0x30] sm:$0xf]
    %v420 = vld [vmem:[%s7 + $0x34] sm:$0xf]
    %v421 = vld [vmem:[%s7 + $0x38] sm:$0xf]
    %v422 = vld [vmem:[%s7 + $0x3c] sm:$0xf]
    %v423 = vld [vmem:[#allocation4] sm:$0x1]
    %v425 = vlaneseq
    %v426 = vshrl.u32 %v425, 7
    %v427 = vsub.s32 0, %v426
    %v428 = vrot.slane %v423, %v427
    %v446 = vunpack.c.l.b16 %v407
    %v447 = vunpack.c.l.b16 %v408
    %v448 = vunpack.c.l.b16 %v409
    %v449 = vunpack.c.l.b16 %v410
    %v450 = vunpack.c.l.b16 %v411
    %v451 = vunpack.c.l.b16 %v412
    %v452 = vunpack.c.l.b16 %v413
    %v453 = vunpack.c.l.b16 %v414
    %v454 = vunpack.c.l.b16 %v415
    %v455 = vunpack.c.l.b16 %v416
    %v456 = vunpack.c.l.b16 %v417
    %v457 = vunpack.c.l.b16 %v418
    %v458 = vunpack.c.l.b16 %v419
    %v459 = vunpack.c.l.b16 %v420
    %v460 = vunpack.c.l.b16 %v421
    %v461 = vunpack.c.l.b16 %v422
    %v462 = vpack.c.b16 %v447, %v446
    %v463 = vpack.c.b16 %v449, %v448
    %v464 = vpack.c.b16 %v451, %v450
    %v465 = vpack.c.b16 %v453, %v452
    %v466 = vpack.c.b16 %v455, %v454
    %v467 = vpack.c.b16 %v457, %v456
    %v468 = vpack.c.b16 %v459, %v458
    %v469 = vpack.c.b16 %v461, %v460
    %478 = vmatprep.subr.bf16.mxu0 0
    %479 = vmatpush1.bf16.msra.mxu0 %v462
    %480 = vmatprep.subr.bf16.mxu0 0
    %481 = vmatpush1.bf16.msra.mxu0 %v463
    %482 = vmatprep.subr.bf16.mxu0 0
    %483 = vmatpush1.bf16.msra.mxu0 %v464
    %484 = vmatprep.subr.bf16.mxu0 0
    %485 = vmatpush1.bf16.msra.mxu0 %v465
    %486 = vmatprep.subr.bf16.mxu0 0
    %487 = vmatpush1.bf16.msra.mxu0 %v466
    %488 = vmatprep.subr.bf16.mxu0 0
    %489 = vmatpush1.bf16.msra.mxu0 %v467
    %490 = vmatprep.subr.bf16.mxu0 0
    %491 = vmatpush1.bf16.msra.mxu0 %v468
    %492 = vmatprep.subr.bf16.mxu0 0
    %493 = vmatpush1.bf16.msra.mxu0 %v469
    %494 = vmatprep.subr.bf16.mxu0 0
    %495 = vmatpush1.bf16.msra.mxu0 0
    %496 = vmatprep.subr.bf16.mxu0 0
    %497 = vmatpush1.bf16.msra.mxu0 0
    %498 = vmatprep.subr.bf16.mxu0 0
    %499 = vmatpush1.bf16.msra.mxu0 0
    %500 = vmatprep.subr.bf16.mxu0 0
    %501 = vmatpush1.bf16.msra.mxu0 0
    %502 = vmatprep.subr.bf16.mxu0 0
    %503 = vmatpush1.bf16.msra.mxu0 0
    %504 = vmatprep.subr.bf16.mxu0 0
    %505 = vmatpush1.bf16.msra.mxu0 0
    %506 = vmatprep.subr.bf16.mxu0 0
    %507 = vmatpush1.bf16.msra.mxu0 0
    %508 = vmatprep.subr.bf16.mxu0 0
    %509 = vmatpush1.bf16.msra.mxu0 0
    %510 = vmatprep.mubr.bf16.mxu0 0
    %511 = vmatmul.mubr.bf16.gmra.mrb[0].mxu0 %v406
    %v512 = vpop.f32.mrb[0].mxu0
    %v513 = vadd.f32 %v428, %v512
    %v514 = vpop.f32.mrb[0].mxu0
    %v515 = vpop.f32.mrb[0].mxu0
    %v516 = vadd.f32 %v428, %v515
    %v517 = vpop.f32.mrb[0].mxu0
    %518 = vdwg.mxu0
    %vm519 = vcmask 261120
    %520 = vst.msk [vmem:[%s9] sm:$0xff] %vm519, %v513
    %521 = vst.msk [vmem:[%s9 + $0x8] sm:$0xff] %vm519, %v516
    // Predicated region
    $region46: #{nbeats_block_forward.1} parent=1 // pred_check
      _
    $region47: #{nbeats_block_forward.1} parent=1 // pred_check_branch
      %523 = sbr.rel (0) target = $region49
    $region48: #{nbeats_block_forward.1} parent=1 // pred_region
      _
    $region49: #{nbeats_block_forward.1} parent=1 // pred_fallthru
      _
    // Predicated region
    $region50: #{nbeats_block_forward.1} parent=1 // pred_check
      _
    $region51: #{nbeats_block_forward.1} parent=1 // pred_check_branch
      %525 = sbr.rel (0) target = $region53
    $region52: #{nbeats_block_forward.1} parent=1 // pred_region
      _
    $region53: #{nbeats_block_forward.1} parent=1 // pred_fallthru
      _
    %526 = vsyncpa [#allocation3], 1
    %527 = vsyncpa [#allocation5], 1

</llo_original>
